<compile_context>
chip_gen: v6e
topology: v6e:2x2x1
jax: 0.10.0
libtpu: 0.0.40
codegen_flags: <defaults>
</compile_context>

<pallas_src>
import functools
import math

import jax
import jax.numpy as jnp
from jax.experimental import pallas as pl
from jax.experimental.pallas import tpu as pltpu

NEG = -1e9                      # large negative instead of -inf (no NaN on fully masked rows)
_VMEM_LIMIT = 32 * 1024 * 1024  # conservative: fits v7x's 64 MiB with headroom


# ----------------------------------------------------------------------------
# padding / tiling helpers
# ----------------------------------------------------------------------------
def _round_up(x, m):
    return ((x + m - 1) // m) * m


def _pad2(x, shape):
    return jnp.pad(x, ((0, shape[0] - x.shape[0]), (0, shape[1] - x.shape[1])))


def _pad3(x, s1, s2):
    return jnp.pad(x, ((0, 0), (0, s1 - x.shape[1]), (0, s2 - x.shape[2])))


def _pad_mask2(m, rows, cols, col_fill):
    """Pad an additive float mask: 0 on extra rows, `col_fill` on extra key cols."""
    m = jnp.pad(m, ((0, rows - m.shape[0]), (0, 0)))
    return jnp.pad(m, ((0, 0), (0, cols - m.shape[1])), constant_values=col_fill)


def _sublane_tiles(dim, cap=256):
    """(padded_dim, tile) with tile a multiple of 8 (sublane axis)."""
    d = _round_up(dim, 8)
    if d <= cap:
        return d, d
    return _round_up(dim, cap), cap


def _divisor_tile(dpad, cap):
    """Largest multiple of 128 <= cap that divides dpad (dpad is a multiple of 128)."""
    t = min(cap, dpad)
    while dpad % t != 0:
        t -= 128
    return t


def _to_additive(mask):
    """bool mask (True = cannot attend) -> 0/NEG; float mask -> added as-is."""
    if mask.dtype == jnp.bool_:
        return jnp.where(mask, NEG, 0.0).astype(jnp.float32)
    return mask.astype(jnp.float32)


# ----------------------------------------------------------------------------
# Pallas kernels
# ----------------------------------------------------------------------------
def _linear_kernel(act, x_ref, w_ref, b_ref, o_ref, acc_ref):
    """Tiled x @ w + b with f32 accumulator; bias/activation only on last k step."""
    k = pl.program_id(2)

    @pl.when(k == 0)
    def _init():
        acc_ref[...] = jnp.zeros_like(acc_ref)

    acc_ref[...] += jnp.dot(x_ref[...], w_ref[...],
                            preferred_element_type=jnp.float32)

    @pl.when(k == pl.num_programs(2) - 1)
    def _finalize():
        y = acc_ref[...] + b_ref[...]
        if act == "gelu":
            y = jax.nn.gelu(y, approximate=True)
        o_ref[...] = y.astype(o_ref.dtype)


def pallas_linear(x, w_p, b_p, act=None):
    """x:(M,K) @ w_p:(K_pad,N_pad) + b_p:(1,N_pad).  Returns padded (M_pad,N_pad)."""
    M, K = x.shape
    K_pad, N_pad = w_p.shape
    M_pad, tm = _sublane_tiles(M, cap=256)
    tk = _divisor_tile(K_pad, 512)
    tn = _divisor_tile(N_pad, 256)
    xp = _pad2(x, (M_pad, K_pad))
    grid = (M_pad // tm, N_pad // tn, K_pad // tk)
    return pl.pallas_call(
        functools.partial(_linear_kernel, act),
        grid=grid,
        in_specs=[pl.BlockSpec((tm, tk), lambda i, j, k: (i, k)),
                  pl.BlockSpec((tk, tn), lambda i, j, k: (k, j)),
                  pl.BlockSpec((1, tn), lambda i, j, k: (0, j))],
        out_specs=pl.BlockSpec((tm, tn), lambda i, j, k: (i, j)),
        out_shape=jax.ShapeDtypeStruct((M_pad, N_pad), jnp.float32),
        scratch_shapes=[pltpu.VMEM((tm, tn), jnp.float32)],
        compiler_params=pltpu.CompilerParams(
            dimension_semantics=("parallel", "parallel", "arbitrary"),
            vmem_limit_bytes=_VMEM_LIMIT),
    )(xp, w_p, b_p)


def _encoder_mlp_kernel(x_ref, w1_ref, b1_ref, w2_ref, b2_ref, o_ref):
    """Fused (x @ w1 + b1) -> gelu -> (@ w2 + b2); hidden never leaves VMEM."""
    h = jnp.dot(x_ref[...], w1_ref[...],
                preferred_element_type=jnp.float32) + b1_ref[...]
    h = jax.nn.gelu(h, approximate=True)
    o_ref[...] = (jnp.dot(h, w2_ref[...],
                          preferred_element_type=jnp.float32)
                  + b2_ref[...]).astype(o_ref.dtype)


def pallas_encoder_mlp(x, w1_p, b1_p, w2_p, b2_p):
    """x:(M,E); weights pre-padded to lane-dense shapes.  Returns padded (M_pad,E_pad)."""
    # TODO(synk): for production E/H where resident weights overflow VMEM, tile K
    #             with an accumulator (as in pallas_linear) or pltpu.emit_pipeline.
    M, _ = x.shape
    E_pad, H_pad = w1_p.shape
    M_pad, tm = _sublane_tiles(M, cap=256)
    xp = _pad2(x, (M_pad, E_pad))
    return pl.pallas_call(
        _encoder_mlp_kernel,
        grid=(M_pad // tm,),
        in_specs=[pl.BlockSpec((tm, E_pad), lambda i: (i, 0)),
                  pl.BlockSpec((E_pad, H_pad), lambda i: (0, 0)),
                  pl.BlockSpec((1, H_pad), lambda i: (0, 0)),
                  pl.BlockSpec((H_pad, E_pad), lambda i: (0, 0)),
                  pl.BlockSpec((1, E_pad), lambda i: (0, 0))],
        out_specs=pl.BlockSpec((tm, E_pad), lambda i: (i, 0)),
        out_shape=jax.ShapeDtypeStruct((M_pad, E_pad), jnp.float32),
        compiler_params=pltpu.CompilerParams(
            dimension_semantics=("parallel",),
            vmem_limit_bytes=_VMEM_LIMIT),
    )(xp, w1_p, b1_p, w2_p, b2_p)


def _attn_kernel(scale, q_ref, k_ref, v_ref, qkm_ref, kpad_ref, o_ref):
    """Softmax attention with in-kernel mask broadcast, deferred normalization and
    fused residual add.  q_ref/k_ref/v_ref: (1, tq|Tk, E); qkm: (tq, Tk);
    kpad: (B, Tk) (full, row-indexed by program_id(0))."""
    b = pl.program_id(0)
    x = q_ref[0]                                        # (tq, E)  -- residual source
    k = k_ref[0]                                        # (Tk, E)
    v = v_ref[0]
    # fold 1/sqrt(d) into q (touches Tq*E instead of Tq*Tk elements)
    s = jax.lax.dot_general(x * scale, k, (((1,), (1,)), ((), ())),
                            preferred_element_type=jnp.float32)      # (tq, Tk)
    s = s + qkm_ref[...] + kpad_ref[pl.ds(b, 1), :]                  # in-kernel broadcast
    m = jnp.max(s, axis=-1, keepdims=True)
    p = jnp.exp(s - m)
    denom = jnp.sum(p, axis=-1, keepdims=True)
    o = jnp.dot(p, v, preferred_element_type=jnp.float32)            # (tq, E)
    # normalize the (tq,E) output instead of the (tq,Tk) matrix; EUP reciprocal
    o_ref[0] = x + o * pl.reciprocal(denom, approx=True)             # fused residual


def pallas_attention_residual(q, k, v, qk_mask, kpad_mask):
    """out = q + softmax(q k^T / sqrt(E) + qk_mask + kpad_mask) v
    q:(B,Tq,E) k,v:(B,Tk,E) qk_mask:(Tq,Tk) kpad_mask:(B,Tk) (additive floats)."""
    # TODO(synk): for long Tk, switch to an online-softmax (flash) loop over Tk tiles.
    B, Tq, E = q.shape
    Tk = k.shape[1]
    E_pad = _round_up(E, 128)
    Tk_pad = _round_up(Tk, 128)
    Tq_pad, tq = _sublane_tiles(Tq, cap=128)

    qp = _pad3(q, Tq_pad, E_pad)
    kp = _pad3(k, Tk_pad, E_pad)
    vp = _pad3(v, Tk_pad, E_pad)
    qkm = _pad_mask2(qk_mask, Tq_pad, Tk_pad, NEG)     # padded keys masked out
    kpd = jnp.pad(kpad_mask, ((0, 0), (0, Tk_pad - Tk)), constant_values=NEG)

    scale = 1.0 / math.sqrt(E)
    grid = (B, Tq_pad // tq)
    out = pl.pallas_call(
        functools.partial(_attn_kernel, scale),
        grid=grid,
        in_specs=[pl.BlockSpec((1, tq, E_pad), lambda b, i: (b, i, 0)),
                  pl.BlockSpec((1, Tk_pad, E_pad), lambda b, i: (b, 0, 0)),
                  pl.BlockSpec((1, Tk_pad, E_pad), lambda b, i: (b, 0, 0)),
                  pl.BlockSpec((tq, Tk_pad), lambda b, i: (i, 0)),
                  pl.BlockSpec((B, Tk_pad), lambda b, i: (0, 0))],
        out_specs=pl.BlockSpec((1, tq, E_pad), lambda b, i: (b, i, 0)),
        out_shape=jax.ShapeDtypeStruct((B, Tq_pad, E_pad), jnp.float32),
        compiler_params=pltpu.CompilerParams(
            dimension_semantics=("parallel", "parallel"),
            vmem_limit_bytes=_VMEM_LIMIT),
    )(qp, kp, vp, qkm, kpd)
    return out[:, :Tq, :E]


def _span_agg_kernel(num_windows, window_size, slide_step, seq_len, reprs_ref, out_ref):
    # 'avg' choice of Seq2seqModel.span_aggregation:
    # window_reprs[:, w, :] = reprs[:, w*step, :] + reprs[:, min(w*step+W-1, S-1), :]
    r = reprs_ref[...]
    if slide_step == 1:
        # two dense slabs + one vectorized lane-dense add/store (no clamping occurs
        # for step==1 since NW = S - W + 1).
        out_ref[...] = r[:, 0:num_windows, :] + r[:, window_size - 1:window_size - 1 + num_windows, :]
    else:
        # TODO(synk): strided slab gather (pl.ds stride) for slide_step > 1.
        for w in range(num_windows):
            i = w * slide_step
            j = min(i + window_size - 1, seq_len - 1)
            out_ref[:, w, :] = r[:, i, :] + r[:, j, :]


def pallas_span_aggregation(reprs, window_size, slide_step):
    B, S, E = reprs.shape
    num_windows = len(range(0, S - window_size + slide_step, slide_step))
    if num_windows == 0:
        # original empty-sequence fallback: sum over the whole sequence
        return jnp.sum(reprs, axis=1, keepdims=True)
    E_pad = _round_up(E, 128)
    rp = jnp.pad(reprs, ((0, 0), (0, 0), (0, E_pad - E)))
    out = pl.pallas_call(
        functools.partial(_span_agg_kernel, num_windows, window_size, slide_step, S),
        grid=(1,),
        in_specs=[pl.BlockSpec((B, S, E_pad), lambda i: (0, 0, 0))],
        out_specs=pl.BlockSpec((B, num_windows, E_pad), lambda i: (0, 0, 0)),
        out_shape=jax.ShapeDtypeStruct((B, num_windows, E_pad), jnp.float32),
    )(rp)
    return out[:, :, :E]


# ----------------------------------------------------------------------------
# Seq2seqModel in JAX + Pallas
# ----------------------------------------------------------------------------
class Seq2seqModelPallas:
    def __init__(self, word_embed_size, vocab_size, hidden_size, max_seq_len,
                 window_size, slide_step, span_aggregation_choice="avg",
                 masking_ratio=0.15, masking_weight=1.0, seed=0):
        assert span_aggregation_choice == "avg"
        self.E = word_embed_size
        self.V = vocab_size
        self.H = hidden_size
        self.window_size = window_size
        self.slide_step = slide_step
        self.masking_ratio = masking_ratio
        self.masking_weight = masking_weight

        key = jax.random.PRNGKey(seed)
        ks = jax.random.split(key, 8)
        sc = 0.02
        # shared embeddings (decoder.embeddings = encoder.get_embedding_layer())
        self.word_emb = sc * jax.random.normal(ks[0], (vocab_size, word_embed_size), jnp.float32)
        self.tok_type_emb = sc * jax.random.normal(ks[1], (2, word_embed_size), jnp.float32)
        self.pos_emb = sc * jax.random.normal(ks[2], (max_seq_len, word_embed_size), jnp.float32)

        # lane-dense padded dims (weights pre-padded once; zero padding never
        # contaminates the valid region, which is sliced out after each kernel)
        E_pad = _round_up(word_embed_size, 128)
        H_pad = _round_up(hidden_size, 128)
        V_pad = _round_up(vocab_size, 128)
        self.E_pad, self.H_pad, self.V_pad = E_pad, H_pad, V_pad

        # synthetic encoder MLP
        enc_w1 = sc * jax.random.normal(ks[3], (word_embed_size, hidden_size), jnp.float32)
        enc_w2 = sc * jax.random.normal(ks[4], (hidden_size, word_embed_size), jnp.float32)
        self.enc_w1_p = _pad2(enc_w1, (E_pad, H_pad))
        self.enc_b1_p = jnp.zeros((1, H_pad), jnp.float32)
        self.enc_w2_p = _pad2(enc_w2, (H_pad, E_pad))
        self.enc_b2_p = jnp.zeros((1, E_pad), jnp.float32)
        # synthetic decoder output projection
        out_w = sc * jax.random.normal(ks[5], (word_embed_size, vocab_size), jnp.float32)
        self.out_w_p = _pad2(out_w, (E_pad, V_pad))
        self.out_b_p = jnp.zeros((1, V_pad), jnp.float32)
        # deterministic randomness for masking_strategy (replaces random/torch.rand)
        self._mask_key = ks[6]

    # ---- encoder (synthetic stand-in for the injected BERT-like encoder) ----
    def encoder(self, input_ids, attention_mask, token_type_ids):
        B, S = input_ids.shape
        x = (self.word_emb[input_ids]
             + self.tok_type_emb[token_type_ids]
             + self.pos_emb[jnp.arange(S)][None, :, :])            # (B, S, E)
        y = pallas_encoder_mlp(x.reshape(B * S, self.E),
                               self.enc_w1_p, self.enc_b1_p,
                               self.enc_w2_p, self.enc_b2_p)       # fused 2-layer MLP
        return y[:B * S, :self.E].reshape(B, S, self.E)

    # ---- span_aggregation ('avg') -------------------------------------------
    def span_aggregation(self, reprs, attention_mask, input_ids=None):
        B, S, E = reprs.shape
        window_reprs = pallas_span_aggregation(reprs, self.window_size, self.slide_step)
        NW = window_reprs.shape[1]

        # padding masks (reproduces the original arithmetic, incl. negative-index slicing)
        batch_num_reprs = S - jnp.sum(attention_mask.astype(jnp.float32), axis=1)
        batch_num_new_attn = jnp.ceil(
            (batch_num_reprs - self.window_size) / self.slide_step + 1).astype(jnp.int32)
        start = jnp.where(batch_num_new_attn < 0, NW + batch_num_new_attn, batch_num_new_attn)
        start = jnp.clip(start, 0, NW)
        padding_masks = jnp.arange(NW)[None, :] >= start[:, None]          # (B, NW) bool

        spans = None
        if input_ids is not None:
            # instance_ids.unfold(0, 5, 1)  (hardcoded 5 in the original)
            idx = jnp.arange(S - 5 + 1)[:, None] + jnp.arange(5)[None, :]
            spans = input_ids[:, idx]                                      # (B, S-4, 5)
        return window_reprs, padding_masks, spans

    # ---- masking_strategy ----------------------------------------------------
    def masking_strategy(self, span_ids, target_max_len, num_spans, batch_size):
        W, step = self.window_size, self.slide_step
        k1, k2 = jax.random.split(self._mask_key)
        start_index = int(jax.random.randint(k1, (), 0, W))                # ~ random.randint(0, W-1)
        base = jnp.array([1 if i % W != start_index else 0
                          for i in range(num_spans)], dtype=bool)
        masks = jnp.tile(base[None, :], (target_max_len, 1))               # (T, NW) bool
        if self.masking_ratio > 0:
            rand_table = jax.random.uniform(k2, masks.shape) < self.masking_ratio
            masks = masks | rand_table

        masked_ids = None
        if span_ids is not None:
            row0 = masks[0]                                                # (NW,)
            idx = jnp.arange(num_spans)
            start_inds = idx * step
            valid = start_inds < target_max_len                            # loop `break` condition
            t = jnp.arange(target_max_len)
            covers = (t[None, :] >= start_inds[:, None]) & \
                     (t[None, :] < start_inds[:, None] + W)                # (NW, T)
            zero_pos = jnp.any(covers & (~row0)[:, None] & valid[:, None], axis=0)
            target_masked_ids = jnp.where(zero_pos, 0, 1).astype(jnp.int32)
            masked_ids = jnp.tile(target_masked_ids[None, :], (batch_size, 1))

        if self.masking_weight != 1:
            # float additive mask (PyTorch float-attn-mask semantics); added as-is in decoder
            masks = masks.astype(jnp.float32) * (-self.masking_weight)
        return masks, masked_ids

    # ---- decoder (synthetic stand-in for the injected transformer decoder) ---
    def decoder(self, tgt, span_reprs, tgt_mask, memory_mask,
                tgt_key_padding_mask, memory_key_padding_mask):
        T, B = tgt.shape
        x = self.word_emb[tgt] + self.pos_emb[:T][:, None, :]              # (T, B, E)
        x = jnp.transpose(x, (1, 0, 2))                                    # (B, T, E)
        mem = jnp.transpose(span_reprs, (1, 0, 2))                         # (B, NW, E)

        # masked self-attention over tgt (residual fused in-kernel; masks broadcast in-kernel)
        x = pallas_attention_residual(x, x, x,
                                      _to_additive(tgt_mask),              # (T, T)
                                      _to_additive(tgt_key_padding_mask))  # (B, T)

        # cross-attention to span memory
        x = pallas_attention_residual(x, mem, mem,
                                      _to_additive(memory_mask),               # (T, NW)
                                      _to_additive(memory_key_padding_mask))   # (B, NW)

        logits = pallas_linear(x.reshape(B * T, self.E), self.out_w_p, self.out_b_p)
        logits = logits[:B * T, :self.V]
        return jnp.transpose(logits.reshape(B, T, self.V), (1, 0, 2))      # (T, B, V)

    # ---- forward -------------------------------------------------------------
    def forward(self, encoder_input_ids, encoder_attention_mask,
                encoder_token_type_ids, tgt, tgt_mask, tgt_key_padding_mask):
        out = self.encoder(encoder_input_ids, encoder_attention_mask,
                           encoder_token_type_ids)
        out, memory_key_padding_mask, spans = self.span_aggregation(
            out, attention_mask=encoder_attention_mask, input_ids=encoder_input_ids)
        cur_span_reprs = out
        cur_spans = spans
        out = jnp.transpose(out, (1, 0, 2))                                # (NW, B, E)
        memory_mask, masked_ids = self.masking_strategy(
            span_ids=spans, target_max_len=tgt.shape[0],
            num_spans=out.shape[0], batch_size=encoder_input_ids.shape[0])
        out = self.decoder(tgt=tgt, span_reprs=out, tgt_mask=tgt_mask,
                           memory_mask=memory_mask,
                           tgt_key_padding_mask=tgt_key_padding_mask,
                           memory_key_padding_mask=memory_key_padding_mask)
        return out, masked_ids, cur_span_reprs, cur_spans


# ----------------------------------------------------------------------------
if __name__ == "__main__":
    B, S, T = 2, 16, 8
    E, H, V = 32, 64, 64
    W, STEP = 5, 1

    key = jax.random.PRNGKey(0)
    k_ids, k_tgt = jax.random.split(key)

    encoder_input_ids = jax.random.randint(k_ids, (B, S), 0, V, dtype=jnp.int32)
    encoder_attention_mask = jnp.ones((B, S), dtype=jnp.int32)
    encoder_token_type_ids = jnp.zeros((B, S), dtype=jnp.int32)
    tgt = jax.random.randint(k_tgt, (T, B), 0, V, dtype=jnp.int32)
    # causal mask: True = cannot attend (PyTorch bool-mask convention)
    tgt_mask = jnp.triu(jnp.ones((T, T), dtype=bool), k=1)
    tgt_key_padding_mask = jnp.zeros((B, T), dtype=bool)

    model = Seq2seqModelPallas(word_embed_size=E, vocab_size=V, hidden_size=H,
                               max_seq_len=S, window_size=W, slide_step=STEP,
                               span_aggregation_choice="avg",
                               masking_ratio=0.15, masking_weight=1.0, seed=0)

    out, masked_ids, cur_span_reprs, cur_spans = model.forward(
        encoder_input_ids, encoder_attention_mask, encoder_token_type_ids,
        tgt, tgt_mask, tgt_key_padding_mask)

    jax.block_until_ready((out, masked_ids, cur_span_reprs, cur_spans))

    assert out.shape == (T, B, V)
    assert masked_ids.shape == (B, T)
    assert cur_span_reprs.shape == (B, S - W + 1, E)
    assert cur_spans.shape == (B, S - 5 + 1, 5)
    assert bool(jnp.all(jnp.isfinite(out)))
    print("KERNEL_OK")
</pallas_src>

<mosaic_0001>
module attributes {stable_mosaic.version = 11 : i64} {
  func.func @_encoder_mlp_kernel(%arg0: i32, %arg1: memref<32x128xf32, #tpu.memory_space<vmem>>, %arg2: memref<128x128xf32, #tpu.memory_space<vmem>>, %arg3: memref<1x128xf32, #tpu.memory_space<vmem>>, %arg4: memref<128x128xf32, #tpu.memory_space<vmem>>, %arg5: memref<1x128xf32, #tpu.memory_space<vmem>>, %arg6: memref<32x128xf32, #tpu.memory_space<vmem>>) attributes {dimension_semantics = [#tpu.dimension_semantics<parallel>], iteration_bounds = array<i64: 1>, scalar_prefetch = 0 : i64, scratch_operands = 0 : i64, tpu.core_type = #tpu.core_type<tc>, window_params = [{transform_indices = @transform_0, window_bounds = array<i64: 32, 128>}, {pipeline_mode = #tpu.pipeline_mode<synchronous>, transform_indices = @transform_1, window_bounds = array<i64: 128, 128>}, {pipeline_mode = #tpu.pipeline_mode<synchronous>, transform_indices = @transform_2, window_bounds = array<i64: 1, 128>}, {pipeline_mode = #tpu.pipeline_mode<synchronous>, transform_indices = @transform_3, window_bounds = array<i64: 128, 128>}, {pipeline_mode = #tpu.pipeline_mode<synchronous>, transform_indices = @transform_4, window_bounds = array<i64: 1, 128>}, {transform_indices = @transform_5, window_bounds = array<i64: 32, 128>}]} {
    %c0 = arith.constant 0 : index
    %c0_0 = arith.constant 0 : index
    %0 = vector.load %arg1[%c0, %c0_0] : memref<32x128xf32, #tpu.memory_space<vmem>>, vector<32x128xf32>
    %c0_1 = arith.constant 0 : index
    %c0_2 = arith.constant 0 : index
    %1 = vector.load %arg2[%c0_1, %c0_2] : memref<128x128xf32, #tpu.memory_space<vmem>>, vector<128x128xf32>
    %cst = arith.constant dense<0.000000e+00> : vector<32x128xf32>
    %2 = tpu.matmul %0, %1, %cst {dimension_numbers = #tpu.dot_dimension_numbers<[1], [0], [0], [1], [0, 0, 1, 1], [], []>} : vector<32x128xf32>, vector<128x128xf32>, vector<32x128xf32> -> vector<32x128xf32>
    %c0_3 = arith.constant 0 : index
    %c0_4 = arith.constant 0 : index
    %3 = vector.load %arg3[%c0_3, %c0_4] : memref<1x128xf32, #tpu.memory_space<vmem>>, vector<1x128xf32>
    %4 = vector.broadcast %3 : vector<1x128xf32> to vector<32x128xf32>
    %5 = arith.addf %2, %4 : vector<32x128xf32>
    %6 = arith.mulf %5, %5 : vector<32x128xf32>
    %7 = arith.mulf %5, %6 : vector<32x128xf32>
    %cst_5 = arith.constant 4.471500e-02 : f32
    %8 = vector.broadcast %cst_5 : f32 to vector<32x128xf32>
    %9 = arith.mulf %8, %7 : vector<32x128xf32>
    %10 = arith.addf %5, %9 : vector<32x128xf32>
    %cst_6 = arith.constant 0.797884583 : f32
    %11 = vector.broadcast %cst_6 : f32 to vector<32x128xf32>
    %12 = arith.mulf %11, %10 : vector<32x128xf32>
    %13 = math.tanh %12 : vector<32x128xf32>
    %cst_7 = arith.constant 1.000000e+00 : f32
    %14 = vector.broadcast %cst_7 : f32 to vector<32x128xf32>
    %15 = arith.addf %14, %13 : vector<32x128xf32>
    %cst_8 = arith.constant 5.000000e-01 : f32
    %16 = vector.broadcast %cst_8 : f32 to vector<32x128xf32>
    %17 = arith.mulf %16, %15 : vector<32x128xf32>
    %18 = arith.mulf %5, %17 : vector<32x128xf32>
    %c0_9 = arith.constant 0 : index
    %c0_10 = arith.constant 0 : index
    %19 = vector.load %arg4[%c0_9, %c0_10] : memref<128x128xf32, #tpu.memory_space<vmem>>, vector<128x128xf32>
    %cst_11 = arith.constant dense<0.000000e+00> : vector<32x128xf32>
    %20 = tpu.matmul %18, %19, %cst_11 {dimension_numbers = #tpu.dot_dimension_numbers<[1], [0], [0], [1], [0, 0, 1, 1], [], []>} : vector<32x128xf32>, vector<128x128xf32>, vector<32x128xf32> -> vector<32x128xf32>
    %c0_12 = arith.constant 0 : index
    %c0_13 = arith.constant 0 : index
    %21 = vector.load %arg5[%c0_12, %c0_13] : memref<1x128xf32, #tpu.memory_space<vmem>>, vector<1x128xf32>
    %22 = vector.broadcast %21 : vector<1x128xf32> to vector<32x128xf32>
    %23 = arith.addf %20, %22 : vector<32x128xf32>
    %c0_14 = arith.constant 0 : index
    %c0_15 = arith.constant 0 : index
    %24 = vector.load %arg6[%c0_14, %c0_15] : memref<32x128xf32, #tpu.memory_space<vmem>>, vector<32x128xf32>
    tpu.vector_store %arg6[%c0_14, %c0_15], %23 {strides = array<i32>} : memref<32x128xf32, #tpu.memory_space<vmem>>, vector<32x128xf32>,
    return
  }
  func.func @transform_0(%arg0: i32) -> (i32, i32) {
    %c0_i32 = arith.constant 0 : i32
    %c0_i32_0 = arith.constant 0 : i32
    return %arg0, %c0_i32 : i32, i32
  }
  func.func @transform_1(%arg0: i32) -> (i32, i32) {
    %c0_i32 = arith.constant 0 : i32
    %c0_i32_0 = arith.constant 0 : i32
    %c0_i32_1 = arith.constant 0 : i32
    return %c0_i32, %c0_i32_0 : i32, i32
  }
  func.func @transform_2(%arg0: i32) -> (i32, i32) {
    %c0_i32 = arith.constant 0 : i32
    %c0_i32_0 = arith.constant 0 : i32
    %c0_i32_1 = arith.constant 0 : i32
    return %c0_i32, %c0_i32_0 : i32, i32
  }
  func.func @transform_3(%arg0: i32) -> (i32, i32) {
    %c0_i32 = arith.constant 0 : i32
    %c0_i32_0 = arith.constant 0 : i32
    %c0_i32_1 = arith.constant 0 : i32
    return %c0_i32, %c0_i32_0 : i32, i32
  }
  func.func @transform_4(%arg0: i32) -> (i32, i32) {
    %c0_i32 = arith.constant 0 : i32
    %c0_i32_0 = arith.constant 0 : i32
    %c0_i32_1 = arith.constant 0 : i32
    return %c0_i32, %c0_i32_0 : i32, i32
  }
  func.func @transform_5(%arg0: i32) -> (i32, i32) {
    %c0_i32 = arith.constant 0 : i32
    %c0_i32_0 = arith.constant 0 : i32
    return %arg0, %c0_i32 : i32, i32
  }
}

</mosaic_0001>

<llo_original>
// kernel: tpu_custom_call.1
$region0: #{tpu_custom_call.1}
  #allocation0 [shape = 'u32[]', space=smem, size = 0x4, offset = 0x4, fixed_abs, tag = 'smem constant byte address 0x4 - core index']
  #allocation1 [shape = 'u32[144,128]{1,0:T(1,128)}', space=vmem, size = 0x12000, scoped, tag = 'internal scratch']
  %s0 = inlined_call_operand.hbm [shape: f32[32,128], index: 0, kind: input, shape index: {}]
  %s1 = inlined_call_operand.hbm [shape: f32[128,128], index: 1, kind: input, shape index: {}]
  %s2 = inlined_call_operand.vmem [shape: f32[1,128], index: 2, kind: input, shape index: {}]
  %s3 = inlined_call_operand.hbm [shape: f32[128,128], index: 3, kind: input, shape index: {}]
  %s4 = inlined_call_operand.vmem [shape: f32[1,128], index: 4, kind: input, shape index: {}]
  %s5 = inlined_call_operand.hbm [shape: f32[32,128], index: 5, kind: output, shape index: {}]
  %s6 = sld [smem:[#allocation0]]
  $region42: #{tpu_custom_call.1} parent=0
    _
  %s8 = ssub.s32 1, %s6
  %s9 = scalar_select 0, %s8, %s6
  $region1: #{tpu_custom_call.1} parent=0
    #allocation2 [shape = 'u8[16384]{0}', space=vmem, size = 0x4000, scoped, tag = 'input window, operand 0, single buffered']
    #allocation3 [shape = 's32[1]{0}', space=sflag, size = 0x4, scoped, tag = 'scoped memory for tpu_custom_call.1']
    #allocation4 [shape = 's32[1]{0}', space=sflag, size = 0x4, scoped, tag = 'scoped memory for tpu_custom_call.1']
    #allocation5 [shape = 'u8[65536]{0}', space=vmem, size = 0x10000, scoped, tag = 'input window, operand 1, single buffered']
    #allocation6 [shape = 's32[1]{0}', space=sflag, size = 0x4, scoped, tag = 'scoped memory for tpu_custom_call.1']
    #allocation7 [shape = 'u8[65536]{0}', space=vmem, size = 0x10000, scoped, tag = 'input window, operand 3, single buffered']
    #allocation8 [shape = 'u8[16384]{0}', space=vmem, size = 0x4000, scoped, tag = 'output window, operand 0, single buffered']
    %10 = vsyncpa [#allocation3], 0
    %11 = vsyncpa [#allocation6], 0
    %12 = vsyncpa [#allocation4], 0
    // Predicated region
    $region2: #{tpu_custom_call.1} parent=1 // pred_check
      _
    $region3: #{tpu_custom_call.1} parent=1 // pred_check_branch
      %14 = sbr.rel (0) target = $region5
    $region4: #{tpu_custom_call.1} parent=1 // pred_region
      %s16 = ssub.s32 512, 512
      %17 = vsyncadd [#allocation3], %s16
      %s18 = sshll.u32 [#allocation2], 4
      %s19 = int_to_ptr.vmem [resolvable:$true] %s18
      %24 = dma.hbm_to_vmem [thread:$0]  %s0, 512, %s19, [#allocation3], 128, 128, 8
    $region5: #{tpu_custom_call.1} parent=1 // pred_fallthru
      _
    // Predicated region
    $region6: #{tpu_custom_call.1} parent=1 // pred_check
      _
    $region7: #{tpu_custom_call.1} parent=1 // pred_check_branch
      %26 = sbr.rel (0) target = $region9
    $region8: #{tpu_custom_call.1} parent=1 // pred_region
      %s28 = ssub.s32 2048, 2048
      %29 = vsyncadd [#allocation6], %s28
      %s30 = sshll.u32 [#allocation5], 4
      %s31 = int_to_ptr.vmem [resolvable:$true] %s30
      %36 = dma.hbm_to_vmem [thread:$0]  %s1, 2048, %s31, [#allocation6], 128, 128, 8
    $region9: #{tpu_custom_call.1} parent=1 // pred_fallthru
      _
    // Predicated region
    $region10: #{tpu_custom_call.1} parent=1 // pred_check
      _
    $region11: #{tpu_custom_call.1} parent=1 // pred_check_branch
      %38 = sbr.rel (0) target = $region13
    $region12: #{tpu_custom_call.1} parent=1 // pred_region
      _
    $region13: #{tpu_custom_call.1} parent=1 // pred_fallthru
      _
    // Predicated region
    $region14: #{tpu_custom_call.1} parent=1 // pred_check
      _
    $region15: #{tpu_custom_call.1} parent=1 // pred_check_branch
      %40 = sbr.rel (0) target = $region17
    $region16: #{tpu_custom_call.1} parent=1 // pred_region
      %s42 = ssub.s32 2048, 2048
      %43 = vsyncadd [#allocation6], %s42
      %s44 = sshll.u32 [#allocation7], 4
      %s45 = int_to_ptr.vmem [resolvable:$true] %s44
      %50 = dma.hbm_to_vmem [thread:$0]  %s3, 2048, %s45, [#allocation6], 128, 128, 8
    $region17: #{tpu_custom_call.1} parent=1 // pred_fallthru
      _
    // Predicated region
    $region18: #{tpu_custom_call.1} parent=1 // pred_check
      _
    $region19: #{tpu_custom_call.1} parent=1 // pred_check_branch
      %52 = sbr.rel (0) target = $region21
    $region20: #{tpu_custom_call.1} parent=1 // pred_region
      _
    $region21: #{tpu_custom_call.1} parent=1 // pred_fallthru
      _
    // Predicated region
    $region22: #{tpu_custom_call.1} parent=1 // pred_check
      _
    $region23: #{tpu_custom_call.1} parent=1 // pred_check_branch
      %54 = sbr.rel (0) target = $region25
    $region24: #{tpu_custom_call.1} parent=1 // pred_region
      %55 = dma.done [#allocation3], 512
    $region25: #{tpu_custom_call.1} parent=1 // pred_fallthru
      _
    // Predicated region
    $region26: #{tpu_custom_call.1} parent=1 // pred_check
      _
    $region27: #{tpu_custom_call.1} parent=1 // pred_check_branch
      %57 = sbr.rel (0) target = $region29
    $region28: #{tpu_custom_call.1} parent=1 // pred_region
      %58 = dma.done [#allocation6], 2048
    $region29: #{tpu_custom_call.1} parent=1 // pred_fallthru
      _
    // Predicated region
    $region30: #{tpu_custom_call.1} parent=1 // pred_check
      _
    $region31: #{tpu_custom_call.1} parent=1 // pred_check_branch
      %60 = sbr.rel (0) target = $region33
    $region32: #{tpu_custom_call.1} parent=1 // pred_region
      %61 = dma.done [#allocation6], 2048
    $region33: #{tpu_custom_call.1} parent=1 // pred_fallthru
      _
    %v62 = vld [vmem:[#allocation2] sm:$0xff]
    %v63 = vld [vmem:[#allocation2 + $0x8] sm:$0xff]
    %v64 = vld [vmem:[#allocation2 + $0x10] sm:$0xff]
    %v65 = vld [vmem:[#allocation2 + $0x18] sm:$0xff]
    %v66 = vld [vmem:[#allocation5] sm:$0xff]
    %v67 = vld [vmem:[#allocation5 + $0x8] sm:$0xff]
    %v68 = vld [vmem:[#allocation5 + $0x10] sm:$0xff]
    %v69 = vld [vmem:[#allocation5 + $0x18] sm:$0xff]
    %v70 = vld [vmem:[#allocation5 + $0x20] sm:$0xff]
    %v71 = vld [vmem:[#allocation5 + $0x28] sm:$0xff]
    %v72 = vld [vmem:[#allocation5 + $0x30] sm:$0xff]
    %v73 = vld [vmem:[#allocation5 + $0x38] sm:$0xff]
    %v74 = vld [vmem:[#allocation5 + $0x40] sm:$0xff]
    %v75 = vld [vmem:[#allocation5 + $0x48] sm:$0xff]
    %v76 = vld [vmem:[#allocation5 + $0x50] sm:$0xff]
    %v77 = vld [vmem:[#allocation5 + $0x58] sm:$0xff]
    %v78 = vld [vmem:[#allocation5 + $0x60] sm:$0xff]
    %v79 = vld [vmem:[#allocation5 + $0x68] sm:$0xff]
    %v80 = vld [vmem:[#allocation5 + $0x70] sm:$0xff]
    %v81 = vld [vmem:[#allocation5 + $0x78] sm:$0xff]
    %v82 = vld [vmem:[%s2] sm:$0x1]
    %v84 = vlaneseq
    %v85 = vshrl.u32 %v84, 7
    %v86 = vsub.s32 0, %v85
    %v87 = vrot.slane %v82, %v86
    %89 = vmatprep.subr.mxu0 0.0
    %90 = vmatpush1.msra.mxu0 %v81
    %91 = vmatprep.subr.mxu0 0.0
    %92 = vmatpush1.msra.mxu0 %v80
    %93 = vmatprep.subr.mxu0 0.0
    %94 = vmatpush1.msra.mxu0 %v79
    %95 = vmatprep.subr.mxu0 0.0
    %96 = vmatpush1.msra.mxu0 %v78
    %97 = vmatprep.subr.mxu0 0.0
    %98 = vmatpush1.msra.mxu0 %v77
    %99 = vmatprep.subr.mxu0 0.0
    %100 = vmatpush1.msra.mxu0 %v76
    %101 = vmatprep.subr.mxu0 0.0
    %102 = vmatpush1.msra.mxu0 %v75
    %103 = vmatprep.subr.mxu0 0.0
    %104 = vmatpush1.msra.mxu0 %v74
    %105 = vmatprep.subr.mxu0 0.0
    %106 = vmatpush1.msra.mxu0 %v73
    %107 = vmatprep.subr.mxu0 0.0
    %108 = vmatpush1.msra.mxu0 %v72
    %109 = vmatprep.subr.mxu0 0.0
    %110 = vmatpush1.msra.mxu0 %v71
    %111 = vmatprep.subr.mxu0 0.0
    %112 = vmatpush1.msra.mxu0 %v70
    %113 = vmatprep.subr.mxu0 0.0
    %114 = vmatpush1.msra.mxu0 %v69
    %115 = vmatprep.subr.mxu0 0.0
    %116 = vmatpush1.msra.mxu0 %v68
    %117 = vmatprep.subr.mxu0 0.0
    %118 = vmatpush1.msra.mxu0 %v67
    %119 = vmatprep.subr.mxu0 0.0
    %120 = vmatpush1.msra.mxu0 %v66
    %121 = vmatprep.subr.mxu0 0.0
    %122 = vmatpush2.msra.mxu0 0.0
    %123 = vmatprep.subr.mxu0 0.0
    %124 = vmatpush2.msra.mxu0 0.0
    %125 = vmatprep.subr.mxu0 0.0
    %126 = vmatpush2.msra.mxu0 0.0
    %127 = vmatprep.subr.mxu0 0.0
    %128 = vmatpush2.msra.mxu0 0.0
    %129 = vmatprep.subr.mxu0 0.0
    %130 = vmatpush2.msra.mxu0 0.0
    %131 = vmatprep.subr.mxu0 0.0
    %132 = vmatpush2.msra.mxu0 0.0
    %133 = vmatprep.subr.mxu0 0.0
    %134 = vmatpush2.msra.mxu0 0.0
    %135 = vmatprep.subr.mxu0 0.0
    %136 = vmatpush2.msra.mxu0 0.0
    %137 = vmatprep.subr.mxu0 0.0
    %138 = vmatpush2.msra.mxu0 0.0
    %139 = vmatprep.subr.mxu0 0.0
    %140 = vmatpush2.msra.mxu0 0.0
    %141 = vmatprep.subr.mxu0 0.0
    %142 = vmatpush2.msra.mxu0 0.0
    %143 = vmatprep.subr.mxu0 0.0
    %144 = vmatpush2.msra.mxu0 0.0
    %145 = vmatprep.subr.mxu0 0.0
    %146 = vmatpush2.msra.mxu0 0.0
    %147 = vmatprep.subr.mxu0 0.0
    %148 = vmatpush2.msra.mxu0 0.0
    %149 = vmatprep.subr.mxu0 0.0
    %150 = vmatpush2.msra.mxu0 0.0
    %151 = vmatprep.subr.mxu0 0.0
    %152 = vmatpush2.msra.mxu0 0.0
    %153 = vmatprep.mubr.f32.mxu0 0.0
    %154 = vmatmul.mubr.f32.gmra.mxu0 %v62
    %v155 = vpop.f32.mrf.mxu0
    %v156 = vadd.f32 %v87, %v155
    %v157 = vpop.f32.mrf.mxu0
    %158 = vmatprep.mubr.f32.mxu0 0.0
    %159 = vmatmul.mubr.f32.gmra.mxu0 %v63
    %v160 = vpop.f32.mrf.mxu0
    %v161 = vadd.f32 %v87, %v160
    %v162 = vpop.f32.mrf.mxu0
    %163 = vmatprep.mubr.f32.mxu0 0.0
    %164 = vmatmul.mubr.f32.gmra.mxu0 %v64
    %v165 = vpop.f32.mrf.mxu0
    %v166 = vadd.f32 %v87, %v165
    %v167 = vpop.f32.mrf.mxu0
    %168 = vmatprep.mubr.f32.mxu0 0.0
    %169 = vmatmul.mubr.f32.gmra.mxu0 %v65
    %v170 = vpop.f32.mrf.mxu0
    %v171 = vadd.f32 %v87, %v170
    %v172 = vpop.f32.mrf.mxu0
    %173 = vdwg.mxu0
    %v174 = vmul.f32 %v156, %v156
    %v175 = vmul.f32 %v161, %v161
    %v176 = vmul.f32 %v166, %v166
    %v177 = vmul.f32 %v171, %v171
    %v178 = vmul.f32 %v156, %v174
    %v179 = vmul.f32 %v161, %v175
    %v180 = vmul.f32 %v166, %v176
    %v181 = vmul.f32 %v171, %v177
    %v182 = vmul.f32 %v178, 0.044715
    %v183 = vmul.f32 %v179, 0.044715
    %v184 = vmul.f32 %v180, 0.044715
    %v185 = vmul.f32 %v181, 0.044715
    %v186 = vadd.f32 %v156, %v182
    %v187 = vadd.f32 %v161, %v183
    %v188 = vadd.f32 %v166, %v184
    %v189 = vadd.f32 %v171, %v185
    %v190 = vmul.f32 %v186, 0.7978846
    %v191 = vmul.f32 %v187, 0.7978846
    %v192 = vmul.f32 %v188, 0.7978846
    %v193 = vmul.f32 %v189, 0.7978846
    %v194 = vtanh.pop %v190
    %v195 = vtanh.pop %v191
    %v196 = vtanh.pop %v192
    %v197 = vtanh.pop %v193
    %v198 = vadd.f32 %v194, 1.0
    %v199 = vadd.f32 %v195, 1.0
    %v200 = vadd.f32 %v196, 1.0
    %v201 = vadd.f32 %v197, 1.0
    %v202 = vmul.f32 %v198, 0.5
    %v203 = vmul.f32 %v199, 0.5
    %v204 = vmul.f32 %v200, 0.5
    %v205 = vmul.f32 %v201, 0.5
    %v206 = vmul.f32 %v156, %v202
    %v207 = vmul.f32 %v161, %v203
    %v208 = vmul.f32 %v166, %v204
    %v209 = vmul.f32 %v171, %v205
    %v210 = vld [vmem:[#allocation7] sm:$0xff]
    %v211 = vld [vmem:[#allocation7 + $0x8] sm:$0xff]
    %v212 = vld [vmem:[#allocation7 + $0x10] sm:$0xff]
    %v213 = vld [vmem:[#allocation7 + $0x18] sm:$0xff]
    %v214 = vld [vmem:[#allocation7 + $0x20] sm:$0xff]
    %v215 = vld [vmem:[#allocation7 + $0x28] sm:$0xff]
    %v216 = vld [vmem:[#allocation7 + $0x30] sm:$0xff]
    %v217 = vld [vmem:[#allocation7 + $0x38] sm:$0xff]
    %v218 = vld [vmem:[#allocation7 + $0x40] sm:$0xff]
    %v219 = vld [vmem:[#allocation7 + $0x48] sm:$0xff]
    %v220 = vld [vmem:[#allocation7 + $0x50] sm:$0xff]
    %v221 = vld [vmem:[#allocation7 + $0x58] sm:$0xff]
    %v222 = vld [vmem:[#allocation7 + $0x60] sm:$0xff]
    %v223 = vld [vmem:[#allocation7 + $0x68] sm:$0xff]
    %v224 = vld [vmem:[#allocation7 + $0x70] sm:$0xff]
    %v225 = vld [vmem:[#allocation7 + $0x78] sm:$0xff]
    %v226 = vld [vmem:[%s4] sm:$0x1]
    %v228 = vlaneseq
    %v229 = vshrl.u32 %v228, 7
    %v230 = vsub.s32 0, %v229
    %v231 = vrot.slane %v226, %v230
    %233 = vmatprep.subr.mxu0 0.0
    %234 = vmatpush1.msra.mxu0 %v225
    %235 = vmatprep.subr.mxu0 0.0
    %236 = vmatpush1.msra.mxu0 %v224
    %237 = vmatprep.subr.mxu0 0.0
    %238 = vmatpush1.msra.mxu0 %v223
    %239 = vmatprep.subr.mxu0 0.0
    %240 = vmatpush1.msra.mxu0 %v222
    %241 = vmatprep.subr.mxu0 0.0
    %242 = vmatpush1.msra.mxu0 %v221
    %243 = vmatprep.subr.mxu0 0.0
    %244 = vmatpush1.msra.mxu0 %v220
    %245 = vmatprep.subr.mxu0 0.0
    %246 = vmatpush1.msra.mxu0 %v219
    %247 = vmatprep.subr.mxu0 0.0
    %248 = vmatpush1.msra.mxu0 %v218
    %249 = vmatprep.subr.mxu0 0.0
    %250 = vmatpush1.msra.mxu0 %v217
    %251 = vmatprep.subr.mxu0 0.0
    %252 = vmatpush1.msra.mxu0 %v216
    %253 = vmatprep.subr.mxu0 0.0
    %254 = vmatpush1.msra.mxu0 %v215
    %255 = vmatprep.subr.mxu0 0.0
    %256 = vmatpush1.msra.mxu0 %v214
    %257 = vmatprep.subr.mxu0 0.0
    %258 = vmatpush1.msra.mxu0 %v213
    %259 = vmatprep.subr.mxu0 0.0
    %260 = vmatpush1.msra.mxu0 %v212
    %261 = vmatprep.subr.mxu0 0.0
    %262 = vmatpush1.msra.mxu0 %v211
    %263 = vmatprep.subr.mxu0 0.0
    %264 = vmatpush1.msra.mxu0 %v210
    %265 = vmatprep.subr.mxu0 0.0
    %266 = vmatpush2.msra.mxu0 0.0
    %267 = vmatprep.subr.mxu0 0.0
    %268 = vmatpush2.msra.mxu0 0.0
    %269 = vmatprep.subr.mxu0 0.0
    %270 = vmatpush2.msra.mxu0 0.0
    %271 = vmatprep.subr.mxu0 0.0
    %272 = vmatpush2.msra.mxu0 0.0
    %273 = vmatprep.subr.mxu0 0.0
    %274 = vmatpush2.msra.mxu0 0.0
    %275 = vmatprep.subr.mxu0 0.0
    %276 = vmatpush2.msra.mxu0 0.0
    %277 = vmatprep.subr.mxu0 0.0
    %278 = vmatpush2.msra.mxu0 0.0
    %279 = vmatprep.subr.mxu0 0.0
    %280 = vmatpush2.msra.mxu0 0.0
    %281 = vmatprep.subr.mxu0 0.0
    %282 = vmatpush2.msra.mxu0 0.0
    %283 = vmatprep.subr.mxu0 0.0
    %284 = vmatpush2.msra.mxu0 0.0
    %285 = vmatprep.subr.mxu0 0.0
    %286 = vmatpush2.msra.mxu0 0.0
    %287 = vmatprep.subr.mxu0 0.0
    %288 = vmatpush2.msra.mxu0 0.0
    %289 = vmatprep.subr.mxu0 0.0
    %290 = vmatpush2.msra.mxu0 0.0
    %291 = vmatprep.subr.mxu0 0.0
    %292 = vmatpush2.msra.mxu0 0.0
    %293 = vmatprep.subr.mxu0 0.0
    %294 = vmatpush2.msra.mxu0 0.0
    %295 = vmatprep.subr.mxu0 0.0
    %296 = vmatpush2.msra.mxu0 0.0
    %297 = vmatprep.mubr.f32.mxu0 0.0
    %298 = vmatmul.mubr.f32.gmra.mxu0 %v206
    %v299 = vpop.f32.mrf.mxu0
    %v300 = vadd.f32 %v231, %v299
    %v301 = vpop.f32.mrf.mxu0
    %302 = vmatprep.mubr.f32.mxu0 0.0
    %303 = vmatmul.mubr.f32.gmra.mxu0 %v207
    %v304 = vpop.f32.mrf.mxu0
    %v305 = vadd.f32 %v231, %v304
    %v306 = vpop.f32.mrf.mxu0
    %307 = vmatprep.mubr.f32.mxu0 0.0
    %308 = vmatmul.mubr.f32.gmra.mxu0 %v208
    %v309 = vpop.f32.mrf.mxu0
    %v310 = vadd.f32 %v231, %v309
    %v311 = vpop.f32.mrf.mxu0
    %312 = vmatprep.mubr.f32.mxu0 0.0
    %313 = vmatmul.mubr.f32.gmra.mxu0 %v209
    %v314 = vpop.f32.mrf.mxu0
    %v315 = vadd.f32 %v231, %v314
    %v316 = vpop.f32.mrf.mxu0
    %317 = vdwg.mxu0
    %318 = vst [vmem:[#allocation8] sm:$0xff] %v300
    %319 = vst [vmem:[#allocation8 + $0x8] sm:$0xff] %v305
    %320 = vst [vmem:[#allocation8 + $0x10] sm:$0xff] %v310
    %321 = vst [vmem:[#allocation8 + $0x18] sm:$0xff] %v315
    // Predicated region
    $region34: #{tpu_custom_call.1} parent=1 // pred_check
      _
    $region35: #{tpu_custom_call.1} parent=1 // pred_check_branch
      %323 = sbr.rel (0) target = $region37
    $region36: #{tpu_custom_call.1} parent=1 // pred_region
      %s325 = ssub.s32 512, 512
      %326 = vsyncadd [#allocation4], %s325
      %s327 = sshll.u32 [#allocation8], 4
      %s328 = int_to_ptr.vmem [resolvable:$true] %s327
      %333 = dma.vmem_to_hbm [thread:$0]  %s328, 512, %s5, [#allocation4], 128, 128, 8
    $region37: #{tpu_custom_call.1} parent=1 // pred_fallthru
      _
    // Predicated region
    $region38: #{tpu_custom_call.1} parent=1 // pred_check
      _
    $region39: #{tpu_custom_call.1} parent=1 // pred_check_branch
      %335 = sbr.rel (0) target = $region41
    $region40: #{tpu_custom_call.1} parent=1 // pred_region
      %336 = dma.done [#allocation4], 512
    $region41: #{tpu_custom_call.1} parent=1 // pred_fallthru
      _
    %337 = vsyncpa [#allocation3], 1
    %338 = vsyncpa [#allocation6], 1
    %339 = vsyncpa [#allocation4], 1

</llo_original>
